<compile_context>
chip_gen: v7x
topology: tpu7x:2x2x1
jax: 0.10.0
libtpu: 0.0.40
codegen_flags: <defaults>
</compile_context>

<pallas_src>
import functools
import math

import jax
import jax.numpy as jnp
from jax.experimental import pallas as pl
from jax.experimental.pallas import tpu as pltpu

_LANE = 128      # feature dims of hidden layers padded to multiples of this
_SUBLANE = 8     # batch tile must be a multiple of this


def _round_up(x, m):
    return (x + m - 1) // m * m


def _vmem_capacity_bytes():
    """Physical VMEM per core; conservative fallback if the query fails."""
    try:
        info = pltpu.get_tpu_info()
        for name in ("vmem_capacity_bytes", "vmem_size_bytes", "vmem_bytes"):
            v = getattr(info, name, None)
            if v:
                return int(v)
    except Exception:
        pass
    return 64 * 1024 * 1024   # v7x-safe default


def _supports_bf16_vpu():
    """v6e/v7x have a bf16 VPU; v2-v5 do not (perf-only choice, both compile)."""
    try:
        kind = jax.devices()[0].device_kind.lower()
    except Exception:
        return True
    for tag in ("v2", "v3", "v4", "v5"):
        if tag in kind:
            return False
    return True


def _fused_mlp_kernel(x_ref, *refs, n_layers, bf16_epilogue):
    """refs = (w1, b1, ..., wn, bn, o_ref).

    x_ref: [tm, D0] f32 (cast to bf16 in-kernel), wi: [K_i, N_i] bf16,
    bi: [1, N_i] f32, o_ref: [tm, Dn].
    """
    o_ref = refs[-1]
    wb = refs[:-1]

    h = x_ref[...].astype(jnp.bfloat16)       # activations stay on-chip
    for layer in range(n_layers):
        w_ref = wb[2 * layer]
        b_ref = wb[2 * layer + 1]
        # bf16 x bf16 -> f32 accumulation on the MXU.
        y = jnp.dot(h, w_ref[...], preferred_element_type=jnp.float32)
        if layer < n_layers - 1:
            if bf16_epilogue:
                # bf16 bias + ReLU + requantize: half the VALU work / vreg
                # pressure on v6e/v7x.
                h = jnp.maximum(
                    y.astype(jnp.bfloat16) + b_ref[...].astype(jnp.bfloat16), 0)
            else:
                # f32 epilogue (v5e-safe path).
                h = jnp.maximum(y + b_ref[...], 0.0).astype(jnp.bfloat16)
        else:
            # drop_last_nonlin=True: final bias add in f32, no activation.
            o_ref[...] = (y + b_ref[...]).astype(o_ref.dtype)


def prepare_mlp_params(params):
    """One-time pad+cast of (W[in,out], b[out]) pairs for the fused kernel.

    Hidden (intermediate) feature dims are zero-padded to lane multiples for
    clean MXU/vreg layouts; the input and output feature dims are left at
    their natural sizes so x and the output need no feature padding at
    call time. Weights are cast to bf16 once here (not per forward call).
    """
    n = len(params)
    dims = [params[0][0].shape[0]] + [w.shape[1] for (w, _) in params]
    dims_p = ([dims[0]]
              + [_round_up(d, _LANE) for d in dims[1:-1]]
              + [dims[-1]])
    flat = []
    for li, (w, b) in enumerate(params):
        din, dout = w.shape
        kp, np_ = dims_p[li], dims_p[li + 1]
        w_p = jnp.zeros((kp, np_), jnp.bfloat16)
        w_p = w_p.at[:din, :dout].set(w.astype(jnp.bfloat16))
        b_p = jnp.zeros((1, np_), jnp.float32)
        b_p = b_p.at[0, :dout].set(b.astype(jnp.float32))
        flat += [w_p, b_p]
    assert n >= 1
    return tuple(flat)


@functools.partial(
    jax.jit,
    static_argnames=("batch_tile", "single_buffer_weights", "bf16_epilogue"))
def mlp_forward(x, prepared, *, batch_tile=None, single_buffer_weights=True,
                bf16_epilogue=True):
    """Fused MLP forward. x: [B, D0]; prepared: output of prepare_mlp_params."""
    B, d_in = x.shape
    flat_wb = list(prepared)
    n_layers = len(flat_wb) // 2
    dims_p = [flat_wb[0].shape[0]] + [flat_wb[2 * i].shape[1]
                                      for i in range(n_layers)]
    d_out = dims_p[-1]
    assert dims_p[0] == d_in, (dims_p[0], d_in)

    cap = _vmem_capacity_bytes()
    if batch_tile is None:
        batch_tile = 512 if cap >= 96 * 1024 * 1024 else 256

    # Batch tile: multiple of 8 sublanes, capped at batch_tile; ensure >= 2
    # grid steps when the batch allows it (both v7x TensorCores get work).
    B8 = _round_up(B, _SUBLANE)
    tm = _round_up(min(B8, batch_tile), _SUBLANE)
    if B8 >= 2 * _SUBLANE and pl.cdiv(B8, tm) < 2:
        tm = _round_up(pl.cdiv(B8, 2), _SUBLANE)
    grid_m = pl.cdiv(B8, tm)
    B_pad = grid_m * tm

    # Only the batch axis ever needs padding at call time (cheap, often a
    # no-op). Feature dims stay natural; cast to bf16 happens in-kernel.
    x_in = x if B_pad == B else jnp.pad(x, ((0, B_pad - B), (0, 0)))

    # Input tile over batch; all weights/biases resident. Constant index_map
    # + Buffered(1) => single VMEM buffer per weight (no pointless double
    # buffering of data that never changes across the grid).
    def _const_spec(shape):
        if single_buffer_weights:
            return pl.BlockSpec(shape, lambda i: (0, 0),
                                pipeline_mode=pl.Buffered(1))
        return pl.BlockSpec(shape, lambda i: (0, 0))

    in_specs = [pl.BlockSpec((tm, d_in), lambda i: (i, 0))]
    for li in range(n_layers):
        in_specs.append(_const_spec((dims_p[li], dims_p[li + 1])))
        in_specs.append(_const_spec((1, dims_p[li + 1])))
    out_spec = pl.BlockSpec((tm, d_out), lambda i: (i, 0))

    # VMEM budget: double-buffered x/out tiles, weights counted once (or twice
    # if not single-buffered), plus the PEAK (not sum) per-layer activation
    # footprint (prev bf16 h + current f32 accumulator).
    wbuf = 1 if single_buffer_weights else 2
    vmem_est = 2 * tm * d_in * 4 + 2 * tm * d_out * 4
    act_peak = 0
    for li in range(n_layers):
        kp, np_ = dims_p[li], dims_p[li + 1]
        vmem_est += wbuf * (kp * np_ * 2 + np_ * 4)
        act_peak = max(act_peak, tm * (2 * kp + 4 * np_))
    vmem_est += act_peak

    headroom = 12 * 1024 * 1024
    usable = max(cap - headroom, 16 * 1024 * 1024)
    vmem_limit = int(min(usable, max(32 * 1024 * 1024, vmem_est * 3 // 2)))
    # TODO(synk): if the resident-weight working set exceeds usable VMEM (very
    # wide layers on v7x), fall back to streaming weights from HBM
    # (memory_space=pl.ANY + pltpu.emit_pipeline) instead of all-resident.

    kernel = functools.partial(_fused_mlp_kernel, n_layers=n_layers,
                               bf16_epilogue=bf16_epilogue)

    out_p = pl.pallas_call(
        kernel,
        out_shape=jax.ShapeDtypeStruct((B_pad, d_out), x.dtype),
        grid=(grid_m,),
        in_specs=in_specs,
        out_specs=out_spec,
        compiler_params=pltpu.CompilerParams(
            dimension_semantics=("parallel",),   # batch tiles shard across TCs
            vmem_limit_bytes=vmem_limit,
        ),
    )(x_in, *flat_wb)

    return out_p if B_pad == B else out_p[:B]


def init_mlp_params(key, hidden_layers):
    """PyTorch nn.Linear default init (uniform +/- 1/sqrt(fan_in)).

    Returns list of (W[in,out], b[out]) pairs (W stored transposed for x @ W).
    """
    params = []
    for in_dim, out_dim in zip(hidden_layers[:-1], hidden_layers[1:]):
        key, kw, kb = jax.random.split(key, 3)
        bound = 1.0 / math.sqrt(in_dim)
        w = jax.random.uniform(kw, (in_dim, out_dim), jnp.float32, -bound, bound)
        b = jax.random.uniform(kb, (out_dim,), jnp.float32, -bound, bound)
        params.append((w, b))
    return params


def mlp_reference(x, params, *, bf16_epilogue):
    """Pure-JAX reference with the same bf16-operand / epilogue precision."""
    n = len(params)
    h = x.astype(jnp.bfloat16)
    y = None
    for i, (w, b) in enumerate(params):
        y = jnp.dot(h, w.astype(jnp.bfloat16),
                    preferred_element_type=jnp.float32)
        if i < n - 1:
            if bf16_epilogue:
                h = jnp.maximum(y.astype(jnp.bfloat16) + b.astype(jnp.bfloat16), 0)
            else:
                h = jnp.maximum(y + b, 0.0).astype(jnp.bfloat16)
        else:
            y = y + b
    return y.astype(x.dtype)


if __name__ == "__main__":
    key = jax.random.PRNGKey(0)
    hidden_layers = [32, 64, 16]   # MLP([32, 64, 16]); batchnorm/dropout off
    batch = 8

    kx, kp = jax.random.split(key)
    x = jax.random.normal(kx, (batch, hidden_layers[0]), jnp.float32)
    params = init_mlp_params(kp, hidden_layers)

    # One-time weight preparation (pad + bf16 cast), hoisted out of forward.
    prepared = jax.block_until_ready(prepare_mlp_params(params))
    bf16_epi = _supports_bf16_vpu()

    try:
        out = jax.block_until_ready(
            mlp_forward(x, prepared, bf16_epilogue=bf16_epi,
                        single_buffer_weights=True))
    except Exception:
        # Fallback if this JAX build rejects Buffered(1) on resident blocks.
        out = jax.block_until_ready(
            mlp_forward(x, prepared, bf16_epilogue=bf16_epi,
                        single_buffer_weights=False))

    ref = mlp_reference(x, params, bf16_epilogue=bf16_epi)
    assert out.shape == (batch, hidden_layers[-1])
    assert jnp.allclose(out, ref, atol=2e-2, rtol=2e-2), (
        float(jnp.max(jnp.abs(out - ref))))

    print("KERNEL_OK")
</pallas_src>

<mosaic_0001>
module attributes {stable_mosaic.version = 11 : i64} {
  func.func @_fused_mlp_kernel(%arg0: i32, %arg1: memref<8x32xf32, #tpu.memory_space<vmem>>, %arg2: memref<32x128xbf16, #tpu.memory_space<vmem>>, %arg3: memref<1x128xf32, #tpu.memory_space<vmem>>, %arg4: memref<128x16xbf16, #tpu.memory_space<vmem>>, %arg5: memref<1x16xf32, #tpu.memory_space<vmem>>, %arg6: memref<8x16xf32, #tpu.memory_space<vmem>>) attributes {dimension_semantics = [#tpu.dimension_semantics<parallel>], iteration_bounds = array<i64: 1>, scalar_prefetch = 0 : i64, scratch_operands = 0 : i64, tpu.core_type = #tpu.core_type<tc>, window_params = [{transform_indices = @transform_0, window_bounds = array<i64: 8, 32>}, {pipeline_mode = #tpu.pipeline_mode<synchronous>, transform_indices = @transform_1, window_bounds = array<i64: 32, 128>}, {pipeline_mode = #tpu.pipeline_mode<synchronous>, transform_indices = @transform_2, window_bounds = array<i64: 1, 128>}, {pipeline_mode = #tpu.pipeline_mode<synchronous>, transform_indices = @transform_3, window_bounds = array<i64: 128, 16>}, {pipeline_mode = #tpu.pipeline_mode<synchronous>, transform_indices = @transform_4, window_bounds = array<i64: 1, 16>}, {transform_indices = @transform_5, window_bounds = array<i64: 8, 16>}]} {
    %c0 = arith.constant 0 : index
    %c0_0 = arith.constant 0 : index
    %0 = vector.load %arg1[%c0, %c0_0] : memref<8x32xf32, #tpu.memory_space<vmem>>, vector<8x32xf32>
    %1 = arith.truncf %0 : vector<8x32xf32> to vector<8x32xbf16>
    %c0_1 = arith.constant 0 : index
    %c0_2 = arith.constant 0 : index
    %2 = vector.load %arg2[%c0_1, %c0_2] : memref<32x128xbf16, #tpu.memory_space<vmem>>, vector<32x128xbf16>
    %cst = arith.constant dense<0.000000e+00> : vector<8x128xf32>
    %3 = tpu.matmul %1, %2, %cst {dimension_numbers = #tpu.dot_dimension_numbers<[1], [0], [0], [1], [0, 0, 1, 1], [], []>} : vector<8x32xbf16>, vector<32x128xbf16>, vector<8x128xf32> -> vector<8x128xf32>
    %4 = arith.truncf %3 : vector<8x128xf32> to vector<8x128xbf16>
    %c0_3 = arith.constant 0 : index
    %c0_4 = arith.constant 0 : index
    %5 = vector.load %arg3[%c0_3, %c0_4] : memref<1x128xf32, #tpu.memory_space<vmem>>, vector<1x128xf32>
    %6 = arith.truncf %5 : vector<1x128xf32> to vector<1x128xbf16>
    %7 = vector.broadcast %6 : vector<1x128xbf16> to vector<8x128xbf16>
    %8 = arith.addf %4, %7 : vector<8x128xbf16>
    %cst_5 = arith.constant 0.000000e+00 : bf16
    %9 = vector.broadcast %cst_5 : bf16 to vector<8x128xbf16>
    %10 = arith.maximumf %8, %9 : vector<8x128xbf16>
    %c0_6 = arith.constant 0 : index
    %c0_7 = arith.constant 0 : index
    %11 = vector.load %arg4[%c0_6, %c0_7] : memref<128x16xbf16, #tpu.memory_space<vmem>>, vector<128x16xbf16>
    %cst_8 = arith.constant dense<0.000000e+00> : vector<8x16xf32>
    %12 = tpu.matmul %10, %11, %cst_8 {dimension_numbers = #tpu.dot_dimension_numbers<[1], [0], [0], [1], [0, 0, 1, 1], [], []>} : vector<8x128xbf16>, vector<128x16xbf16>, vector<8x16xf32> -> vector<8x16xf32>
    %c0_9 = arith.constant 0 : index
    %c0_10 = arith.constant 0 : index
    %13 = vector.load %arg5[%c0_9, %c0_10] : memref<1x16xf32, #tpu.memory_space<vmem>>, vector<1x16xf32>
    %14 = vector.broadcast %13 : vector<1x16xf32> to vector<8x16xf32>
    %15 = arith.addf %12, %14 : vector<8x16xf32>
    %c0_11 = arith.constant 0 : index
    %c0_12 = arith.constant 0 : index
    %16 = vector.load %arg6[%c0_11, %c0_12] : memref<8x16xf32, #tpu.memory_space<vmem>>, vector<8x16xf32>
    tpu.vector_store %arg6[%c0_11, %c0_12], %15 {strides = array<i32>} : memref<8x16xf32, #tpu.memory_space<vmem>>, vector<8x16xf32>,
    return
  }
  func.func @transform_0(%arg0: i32) -> (i32, i32) {
    %c0_i32 = arith.constant 0 : i32
    %c0_i32_0 = arith.constant 0 : i32
    return %arg0, %c0_i32 : i32, i32
  }
  func.func @transform_1(%arg0: i32) -> (i32, i32) {
    %c0_i32 = arith.constant 0 : i32
    %c0_i32_0 = arith.constant 0 : i32
    %c0_i32_1 = arith.constant 0 : i32
    return %c0_i32, %c0_i32_0 : i32, i32
  }
  func.func @transform_2(%arg0: i32) -> (i32, i32) {
    %c0_i32 = arith.constant 0 : i32
    %c0_i32_0 = arith.constant 0 : i32
    %c0_i32_1 = arith.constant 0 : i32
    return %c0_i32, %c0_i32_0 : i32, i32
  }
  func.func @transform_3(%arg0: i32) -> (i32, i32) {
    %c0_i32 = arith.constant 0 : i32
    %c0_i32_0 = arith.constant 0 : i32
    %c0_i32_1 = arith.constant 0 : i32
    return %c0_i32, %c0_i32_0 : i32, i32
  }
  func.func @transform_4(%arg0: i32) -> (i32, i32) {
    %c0_i32 = arith.constant 0 : i32
    %c0_i32_0 = arith.constant 0 : i32
    %c0_i32_1 = arith.constant 0 : i32
    return %c0_i32, %c0_i32_0 : i32, i32
  }
  func.func @transform_5(%arg0: i32) -> (i32, i32) {
    %c0_i32 = arith.constant 0 : i32
    %c0_i32_0 = arith.constant 0 : i32
    return %arg0, %c0_i32 : i32, i32
  }
}

module attributes {stable_mosaic.version = 11 : i64} {
  func.func @_fused_mlp_kernel(%arg0: i32, %arg1: memref<8x32xf32, #tpu.memory_space<vmem>>, %arg2: memref<32x128xbf16, #tpu.memory_space<vmem>>, %arg3: memref<1x128xf32, #tpu.memory_space<vmem>>, %arg4: memref<128x16xbf16, #tpu.memory_space<vmem>>, %arg5: memref<1x16xf32, #tpu.memory_space<vmem>>, %arg6: memref<8x16xf32, #tpu.memory_space<vmem>>) attributes {dimension_semantics = [#tpu.dimension_semantics<parallel>], iteration_bounds = array<i64: 1>, scalar_prefetch = 0 : i64, scratch_operands = 0 : i64, tpu.core_type = #tpu.core_type<tc>, window_params = [{transform_indices = @transform_0, window_bounds = array<i64: 8, 32>}, {pipeline_mode = #tpu.pipeline_mode<synchronous>, transform_indices = @transform_1, window_bounds = array<i64: 32, 128>}, {pipeline_mode = #tpu.pipeline_mode<synchronous>, transform_indices = @transform_2, window_bounds = array<i64: 1, 128>}, {pipeline_mode = #tpu.pipeline_mode<synchronous>, transform_indices = @transform_3, window_bounds = array<i64: 128, 16>}, {pipeline_mode = #tpu.pipeline_mode<synchronous>, transform_indices = @transform_4, window_bounds = array<i64: 1, 16>}, {transform_indices = @transform_5, window_bounds = array<i64: 8, 16>}]} {
    %c0 = arith.constant 0 : index
    %c0_0 = arith.constant 0 : index
    %0 = vector.load %arg1[%c0, %c0_0] : memref<8x32xf32, #tpu.memory_space<vmem>>, vector<8x32xf32>
    %1 = arith.truncf %0 : vector<8x32xf32> to vector<8x32xbf16>
    %c0_1 = arith.constant 0 : index
    %c0_2 = arith.constant 0 : index
    %2 = vector.load %arg2[%c0_1, %c0_2] : memref<32x128xbf16, #tpu.memory_space<vmem>>, vector<32x128xbf16>
    %cst = arith.constant dense<0.000000e+00> : vector<8x128xf32>
    %3 = tpu.matmul %1, %2, %cst {dimension_numbers = #tpu.dot_dimension_numbers<[1], [0], [0], [1], [0, 0, 1, 1], [], []>} : vector<8x32xbf16>, vector<32x128xbf16>, vector<8x128xf32> -> vector<8x128xf32>
    %4 = arith.truncf %3 : vector<8x128xf32> to vector<8x128xbf16>
    %c0_3 = arith.constant 0 : index
    %c0_4 = arith.constant 0 : index
    %5 = vector.load %arg3[%c0_3, %c0_4] : memref<1x128xf32, #tpu.memory_space<vmem>>, vector<1x128xf32>
    %6 = arith.truncf %5 : vector<1x128xf32> to vector<1x128xbf16>
    %7 = vector.broadcast %6 : vector<1x128xbf16> to vector<8x128xbf16>
    %8 = arith.addf %4, %7 : vector<8x128xbf16>
    %cst_5 = arith.constant 0.000000e+00 : bf16
    %9 = vector.broadcast %cst_5 : bf16 to vector<8x128xbf16>
    %10 = arith.maximumf %8, %9 : vector<8x128xbf16>
    %c0_6 = arith.constant 0 : index
    %c0_7 = arith.constant 0 : index
    %11 = vector.load %arg4[%c0_6, %c0_7] : memref<128x16xbf16, #tpu.memory_space<vmem>>, vector<128x16xbf16>
    %cst_8 = arith.constant dense<0.000000e+00> : vector<8x16xf32>
    %12 = tpu.matmul %10, %11, %cst_8 {dimension_numbers = #tpu.dot_dimension_numbers<[1], [0], [0], [1], [0, 0, 1, 1], [], []>} : vector<8x128xbf16>, vector<128x16xbf16>, vector<8x16xf32> -> vector<8x16xf32>
    %c0_9 = arith.constant 0 : index
    %c0_10 = arith.constant 0 : index
    %13 = vector.load %arg5[%c0_9, %c0_10] : memref<1x16xf32, #tpu.memory_space<vmem>>, vector<1x16xf32>
    %14 = vector.broadcast %13 : vector<1x16xf32> to vector<8x16xf32>
    %15 = arith.addf %12, %14 : vector<8x16xf32>
    %c0_11 = arith.constant 0 : index
    %c0_12 = arith.constant 0 : index
    %16 = vector.load %arg6[%c0_11, %c0_12] : memref<8x16xf32, #tpu.memory_space<vmem>>, vector<8x16xf32>
    tpu.vector_store %arg6[%c0_11, %c0_12], %15 {strides = array<i32>} : memref<8x16xf32, #tpu.memory_space<vmem>>, vector<8x16xf32>,
    return
  }
  func.func @transform_0(%arg0: i32) -> (i32, i32) {
    %c0_i32 = arith.constant 0 : i32
    %c0_i32_0 = arith.constant 0 : i32
    return %arg0, %c0_i32 : i32, i32
  }
  func.func @transform_1(%arg0: i32) -> (i32, i32) {
    %c0_i32 = arith.constant 0 : i32
    %c0_i32_0 = arith.constant 0 : i32
    %c0_i32_1 = arith.constant 0 : i32
    return %c0_i32, %c0_i32_0 : i32, i32
  }
  func.func @transform_2(%arg0: i32) -> (i32, i32) {
    %c0_i32 = arith.constant 0 : i32
    %c0_i32_0 = arith.constant 0 : i32
    %c0_i32_1 = arith.constant 0 : i32
    return %c0_i32, %c0_i32_0 : i32, i32
  }
  func.func @transform_3(%arg0: i32) -> (i32, i32) {
    %c0_i32 = arith.constant 0 : i32
    %c0_i32_0 = arith.constant 0 : i32
    %c0_i32_1 = arith.constant 0 : i32
    return %c0_i32, %c0_i32_0 : i32, i32
  }
  func.func @transform_4(%arg0: i32) -> (i32, i32) {
    %c0_i32 = arith.constant 0 : i32
    %c0_i32_0 = arith.constant 0 : i32
    %c0_i32_1 = arith.constant 0 : i32
    return %c0_i32, %c0_i32_0 : i32, i32
  }
  func.func @transform_5(%arg0: i32) -> (i32, i32) {
    %c0_i32 = arith.constant 0 : i32
    %c0_i32_0 = arith.constant 0 : i32
    return %arg0, %c0_i32 : i32, i32
  }
}

</mosaic_0001>

<llo_original>
// kernel: mlp_forward.1
$region0: #{mlp_forward.1}
  #allocation0 [shape = 'u32[]', space=smem, size = 0x4, offset = 0x4, fixed_abs, tag = 'smem constant byte address 0x4 - core index']
  #allocation1 [shape = 'u32[144,128]{1,0:T(1,128)}', space=vmem, size = 0x12000, scoped, tag = 'internal scratch']
  %s0 = inlined_call_operand.vmem [shape: f32[8,32], index: 0, kind: input, shape index: {}]
  %s1 = inlined_call_operand.vmem [shape: bf16[32,128], index: 1, kind: input, shape index: {}]
  %s2 = inlined_call_operand.vmem [shape: f32[1,128], index: 2, kind: input, shape index: {}]
  %s3 = inlined_call_operand.vmem [shape: bf16[128,16], index: 3, kind: input, shape index: {}]
  %s4 = inlined_call_operand.vmem [shape: f32[1,16], index: 4, kind: input, shape index: {}]
  %s5 = inlined_call_operand.hbm [shape: f32[8,16], index: 5, kind: output, shape index: {}]
  %s6 = sld [smem:[#allocation0]]
  $region30: #{mlp_forward.1} parent=0
    _
  %s8 = ssub.s32 1, %s6
  %s9 = scalar_select 0, %s8, %s6
  $region1: #{mlp_forward.1} parent=0
    #allocation2 [shape = 'u8[4096]{0}', space=vmem, size = 0x1000, scoped, tag = 'output window, operand 0, single buffered']
    #allocation3 [shape = 's32[1]{0}', space=sflag, size = 0x4, scoped, tag = 'scoped memory for mlp_forward.1']
    %10 = vsyncpa [#allocation3], 0
    // Predicated region
    $region2: #{mlp_forward.1} parent=1 // pred_check
      _
    $region3: #{mlp_forward.1} parent=1 // pred_check_branch
      %12 = sbr.rel (0) target = $region5
    $region4: #{mlp_forward.1} parent=1 // pred_region
      _
    $region5: #{mlp_forward.1} parent=1 // pred_fallthru
      _
    // Predicated region
    $region6: #{mlp_forward.1} parent=1 // pred_check
      _
    $region7: #{mlp_forward.1} parent=1 // pred_check_branch
      %14 = sbr.rel (0) target = $region9
    $region8: #{mlp_forward.1} parent=1 // pred_region
      _
    $region9: #{mlp_forward.1} parent=1 // pred_fallthru
      _
    // Predicated region
    $region10: #{mlp_forward.1} parent=1 // pred_check
      _
    $region11: #{mlp_forward.1} parent=1 // pred_check_branch
      %16 = sbr.rel (0) target = $region13
    $region12: #{mlp_forward.1} parent=1 // pred_region
      _
    $region13: #{mlp_forward.1} parent=1 // pred_fallthru
      _
    // Predicated region
    $region14: #{mlp_forward.1} parent=1 // pred_check
      _
    $region15: #{mlp_forward.1} parent=1 // pred_check_branch
      %18 = sbr.rel (0) target = $region17
    $region16: #{mlp_forward.1} parent=1 // pred_region
      _
    $region17: #{mlp_forward.1} parent=1 // pred_fallthru
      _
    // Predicated region
    $region18: #{mlp_forward.1} parent=1 // pred_check
      _
    $region19: #{mlp_forward.1} parent=1 // pred_check_branch
      %20 = sbr.rel (0) target = $region21
    $region20: #{mlp_forward.1} parent=1 // pred_region
      _
    $region21: #{mlp_forward.1} parent=1 // pred_fallthru
      _
    %v22 = vld [vmem:[%s0] sm:$0xff]
    %v23 = vpack.c.bf16 %v22, %v22
    %v24 = vld [vmem:[%s1] sm:$0xf]
    %v25 = vld [vmem:[%s1 + $0x4] sm:$0xf]
    %v26 = vld [vmem:[%s1 + $0x8] sm:$0xf]
    %v27 = vld [vmem:[%s1 + $0xc] sm:$0xf]
    %v32 = vunpack.c.l.b16 %v24
    %v33 = vunpack.c.l.b16 %v25
    %v34 = vunpack.c.l.b16 %v26
    %v35 = vunpack.c.l.b16 %v27
    %v36 = vpack.c.b16 %v33, %v32
    %v37 = vpack.c.b16 %v35, %v34
    %vm40 = vcmask 261120
    %v42 = vsel %vm40, %v23, 0
    %44 = vmatprep.subr.bf16.mxu0 0
    %45 = vmatpush1.bf16.msra.mxu0 %v36
    %46 = vmatprep.subr.bf16.mxu0 0
    %47 = vmatpush1.bf16.msra.mxu0 %v37
    %48 = vmatprep.subr.bf16.mxu0 0
    %49 = vmatpush1.bf16.msra.mxu0 0
    %50 = vmatprep.subr.bf16.mxu0 0
    %51 = vmatpush1.bf16.msra.mxu0 0
    %52 = vmatprep.subr.bf16.mxu0 0
    %53 = vmatpush1.bf16.msra.mxu0 0
    %54 = vmatprep.subr.bf16.mxu0 0
    %55 = vmatpush1.bf16.msra.mxu0 0
    %56 = vmatprep.subr.bf16.mxu0 0
    %57 = vmatpush1.bf16.msra.mxu0 0
    %58 = vmatprep.subr.bf16.mxu0 0
    %59 = vmatpush1.bf16.msra.mxu0 0
    %60 = vmatprep.subr.bf16.mxu0 0
    %61 = vmatpush1.bf16.msra.mxu0 0
    %62 = vmatprep.subr.bf16.mxu0 0
    %63 = vmatpush1.bf16.msra.mxu0 0
    %64 = vmatprep.subr.bf16.mxu0 0
    %65 = vmatpush1.bf16.msra.mxu0 0
    %66 = vmatprep.subr.bf16.mxu0 0
    %67 = vmatpush1.bf16.msra.mxu0 0
    %68 = vmatprep.subr.bf16.mxu0 0
    %69 = vmatpush1.bf16.msra.mxu0 0
    %70 = vmatprep.subr.bf16.mxu0 0
    %71 = vmatpush1.bf16.msra.mxu0 0
    %72 = vmatprep.subr.bf16.mxu0 0
    %73 = vmatpush1.bf16.msra.mxu0 0
    %74 = vmatprep.subr.bf16.mxu0 0
    %75 = vmatpush1.bf16.msra.mxu0 0
    %76 = vmatprep.mubr.bf16.mxu0 0
    %77 = vmatmul.mubr.bf16.gmra.mrb[0].mxu0 %v42
    %v78 = vpop.f32.mrb[0].mxu0
    %v79 = vadd.f32 0.0, %v78
    %v80 = vpop.f32.mrb[0].mxu0
    %v81 = vpop.f32.mrb[0].mxu0
    %v82 = vpop.f32.mrb[0].mxu0
    %83 = vdwg.mxu0
    %v84 = vpack.c.bf16 %v79, %v79
    %v85 = vld [vmem:[%s2] sm:$0x1]
    %v86 = vpack.c.bf16 %v85, %v85
    %v88 = vpack.i.b16 %v86, %v86
    %v90 = vlaneseq
    %v91 = vshrl.u32 %v90, 7
    %v92 = vsub.s32 0, %v91
    %v93 = vrot.slane %v88, %v92
    %v94 = vadd.bf16 %v84, %v93
    %v95 = vmax.bf16 %v94, 0
    %v96 = vld [vmem:[%s3] sm:$0xf]
    %v97 = vld [vmem:[%s3 + $0x4] sm:$0xf]
    %v98 = vld [vmem:[%s3 + $0x8] sm:$0xf]
    %v99 = vld [vmem:[%s3 + $0xc] sm:$0xf]
    %v100 = vld [vmem:[%s3 + $0x10] sm:$0xf]
    %v101 = vld [vmem:[%s3 + $0x14] sm:$0xf]
    %v102 = vld [vmem:[%s3 + $0x18] sm:$0xf]
    %v103 = vld [vmem:[%s3 + $0x1c] sm:$0xf]
    %v104 = vld [vmem:[%s3 + $0x20] sm:$0xf]
    %v105 = vld [vmem:[%s3 + $0x24] sm:$0xf]
    %v106 = vld [vmem:[%s3 + $0x28] sm:$0xf]
    %v107 = vld [vmem:[%s3 + $0x2c] sm:$0xf]
    %v108 = vld [vmem:[%s3 + $0x30] sm:$0xf]
    %v109 = vld [vmem:[%s3 + $0x34] sm:$0xf]
    %v110 = vld [vmem:[%s3 + $0x38] sm:$0xf]
    %v111 = vld [vmem:[%s3 + $0x3c] sm:$0xf]
    %v112 = vld [vmem:[%s4] sm:$0x1]
    %v114 = vlaneseq
    %v115 = vshrl.u32 %v114, 7
    %v116 = vsub.s32 0, %v115
    %v117 = vrot.slane %v112, %v116
    %v135 = vunpack.c.l.b16 %v96
    %v136 = vunpack.c.l.b16 %v97
    %v137 = vunpack.c.l.b16 %v98
    %v138 = vunpack.c.l.b16 %v99
    %v139 = vunpack.c.l.b16 %v100
    %v140 = vunpack.c.l.b16 %v101
    %v141 = vunpack.c.l.b16 %v102
    %v142 = vunpack.c.l.b16 %v103
    %v143 = vunpack.c.l.b16 %v104
    %v144 = vunpack.c.l.b16 %v105
    %v145 = vunpack.c.l.b16 %v106
    %v146 = vunpack.c.l.b16 %v107
    %v147 = vunpack.c.l.b16 %v108
    %v148 = vunpack.c.l.b16 %v109
    %v149 = vunpack.c.l.b16 %v110
    %v150 = vunpack.c.l.b16 %v111
    %v151 = vpack.c.b16 %v136, %v135
    %v152 = vpack.c.b16 %v138, %v137
    %v153 = vpack.c.b16 %v140, %v139
    %v154 = vpack.c.b16 %v142, %v141
    %v155 = vpack.c.b16 %v144, %v143
    %v156 = vpack.c.b16 %v146, %v145
    %v157 = vpack.c.b16 %v148, %v147
    %v158 = vpack.c.b16 %v150, %v149
    %167 = vmatprep.subr.bf16.mxu0 0
    %168 = vmatpush1.bf16.msra.mxu0 %v151
    %169 = vmatprep.subr.bf16.mxu0 0
    %170 = vmatpush1.bf16.msra.mxu0 %v152
    %171 = vmatprep.subr.bf16.mxu0 0
    %172 = vmatpush1.bf16.msra.mxu0 %v153
    %173 = vmatprep.subr.bf16.mxu0 0
    %174 = vmatpush1.bf16.msra.mxu0 %v154
    %175 = vmatprep.subr.bf16.mxu0 0
    %176 = vmatpush1.bf16.msra.mxu0 %v155
    %177 = vmatprep.subr.bf16.mxu0 0
    %178 = vmatpush1.bf16.msra.mxu0 %v156
    %179 = vmatprep.subr.bf16.mxu0 0
    %180 = vmatpush1.bf16.msra.mxu0 %v157
    %181 = vmatprep.subr.bf16.mxu0 0
    %182 = vmatpush1.bf16.msra.mxu0 %v158
    %183 = vmatprep.subr.bf16.mxu0 0
    %184 = vmatpush1.bf16.msra.mxu0 0
    %185 = vmatprep.subr.bf16.mxu0 0
    %186 = vmatpush1.bf16.msra.mxu0 0
    %187 = vmatprep.subr.bf16.mxu0 0
    %188 = vmatpush1.bf16.msra.mxu0 0
    %189 = vmatprep.subr.bf16.mxu0 0
    %190 = vmatpush1.bf16.msra.mxu0 0
    %191 = vmatprep.subr.bf16.mxu0 0
    %192 = vmatpush1.bf16.msra.mxu0 0
    %193 = vmatprep.subr.bf16.mxu0 0
    %194 = vmatpush1.bf16.msra.mxu0 0
    %195 = vmatprep.subr.bf16.mxu0 0
    %196 = vmatpush1.bf16.msra.mxu0 0
    %197 = vmatprep.subr.bf16.mxu0 0
    %198 = vmatpush1.bf16.msra.mxu0 0
    %199 = vmatprep.mubr.bf16.mxu0 0
    %200 = vmatmul.mubr.bf16.gmra.mrb[0].mxu0 %v95
    %v201 = vpop.f32.mrb[0].mxu0
    %v202 = vadd.f32 %v117, %v201
    %v203 = vpop.f32.mrb[0].mxu0
    %v204 = vpop.f32.mrb[0].mxu0
    %v205 = vpop.f32.mrb[0].mxu0
    %206 = vdwg.mxu0
    %vm207 = vcmask 130048
    %208 = vst.msk [vmem:[#allocation2] sm:$0xff] %vm207, %v202
    // Predicated region
    $region22: #{mlp_forward.1} parent=1 // pred_check
      _
    $region23: #{mlp_forward.1} parent=1 // pred_check_branch
      %210 = sbr.rel (0) target = $region25
    $region24: #{mlp_forward.1} parent=1 // pred_region
      %s212 = ssub.s32 128, 128
      %213 = vsyncadd [#allocation3], %s212
      %s215 = sshll.u32 [#allocation2], 4
      %s216 = int_to_ptr.vmem [resolvable:$true] %s215
      %218 = dma.vmem_to_hbm [thread:$0]  %s216, 128, %s5, [#allocation3]
    $region25: #{mlp_forward.1} parent=1 // pred_fallthru
      _
    // Predicated region
    $region26: #{mlp_forward.1} parent=1 // pred_check
      _
    $region27: #{mlp_forward.1} parent=1 // pred_check_branch
      %220 = sbr.rel (0) target = $region29
    $region28: #{mlp_forward.1} parent=1 // pred_region
      %221 = dma.done [#allocation3], 128
    $region29: #{mlp_forward.1} parent=1 // pred_fallthru
      _
    %222 = vsyncpa [#allocation3], 1

// kernel: mlp_forward.1
$region0: #{mlp_forward.1}
  #allocation0 [shape = 'u32[]', space=smem, size = 0x4, offset = 0x4, fixed_abs, tag = 'smem constant byte address 0x4 - core index']
  #allocation1 [shape = 'u32[144,128]{1,0:T(1,128)}', space=vmem, size = 0x12000, scoped, tag = 'internal scratch']
  %s0 = inlined_call_operand.vmem [shape: f32[8,32], index: 0, kind: input, shape index: {}]
  %s1 = inlined_call_operand.vmem [shape: bf16[32,128], index: 1, kind: input, shape index: {}]
  %s2 = inlined_call_operand.vmem [shape: f32[1,128], index: 2, kind: input, shape index: {}]
  %s3 = inlined_call_operand.vmem [shape: bf16[128,16], index: 3, kind: input, shape index: {}]
  %s4 = inlined_call_operand.vmem [shape: f32[1,16], index: 4, kind: input, shape index: {}]
  %s5 = inlined_call_operand.hbm [shape: f32[8,16], index: 5, kind: output, shape index: {}]
  %s6 = sld [smem:[#allocation0]]
  $region30: #{mlp_forward.1} parent=0
    _
  %s8 = ssub.s32 1, %s6
  %s9 = scalar_select 0, %s8, %s6
  $region1: #{mlp_forward.1} parent=0
    #allocation2 [shape = 'u8[4096]{0}', space=vmem, size = 0x1000, scoped, tag = 'output window, operand 0, single buffered']
    #allocation3 [shape = 's32[1]{0}', space=sflag, size = 0x4, scoped, tag = 'scoped memory for mlp_forward.1']
    %10 = vsyncpa [#allocation3], 0
    // Predicated region
    $region2: #{mlp_forward.1} parent=1 // pred_check
      _
    $region3: #{mlp_forward.1} parent=1 // pred_check_branch
      %12 = sbr.rel (0) target = $region5
    $region4: #{mlp_forward.1} parent=1 // pred_region
      _
    $region5: #{mlp_forward.1} parent=1 // pred_fallthru
      _
    // Predicated region
    $region6: #{mlp_forward.1} parent=1 // pred_check
      _
    $region7: #{mlp_forward.1} parent=1 // pred_check_branch
      %14 = sbr.rel (0) target = $region9
    $region8: #{mlp_forward.1} parent=1 // pred_region
      _
    $region9: #{mlp_forward.1} parent=1 // pred_fallthru
      _
    // Predicated region
    $region10: #{mlp_forward.1} parent=1 // pred_check
      _
    $region11: #{mlp_forward.1} parent=1 // pred_check_branch
      %16 = sbr.rel (0) target = $region13
    $region12: #{mlp_forward.1} parent=1 // pred_region
      _
    $region13: #{mlp_forward.1} parent=1 // pred_fallthru
      _
    // Predicated region
    $region14: #{mlp_forward.1} parent=1 // pred_check
      _
    $region15: #{mlp_forward.1} parent=1 // pred_check_branch
      %18 = sbr.rel (0) target = $region17
    $region16: #{mlp_forward.1} parent=1 // pred_region
      _
    $region17: #{mlp_forward.1} parent=1 // pred_fallthru
      _
    // Predicated region
    $region18: #{mlp_forward.1} parent=1 // pred_check
      _
    $region19: #{mlp_forward.1} parent=1 // pred_check_branch
      %20 = sbr.rel (0) target = $region21
    $region20: #{mlp_forward.1} parent=1 // pred_region
      _
    $region21: #{mlp_forward.1} parent=1 // pred_fallthru
      _
    %v22 = vld [vmem:[%s0] sm:$0xff]
    %v23 = vpack.c.bf16 %v22, %v22
    %v24 = vld [vmem:[%s1] sm:$0xf]
    %v25 = vld [vmem:[%s1 + $0x4] sm:$0xf]
    %v26 = vld [vmem:[%s1 + $0x8] sm:$0xf]
    %v27 = vld [vmem:[%s1 + $0xc] sm:$0xf]
    %v32 = vunpack.c.l.b16 %v24
    %v33 = vunpack.c.l.b16 %v25
    %v34 = vunpack.c.l.b16 %v26
    %v35 = vunpack.c.l.b16 %v27
    %v36 = vpack.c.b16 %v33, %v32
    %v37 = vpack.c.b16 %v35, %v34
    %vm40 = vcmask 261120
    %v42 = vsel %vm40, %v23, 0
    %44 = vmatprep.subr.bf16.mxu0 0
    %45 = vmatpush1.bf16.msra.mxu0 %v36
    %46 = vmatprep.subr.bf16.mxu0 0
    %47 = vmatpush1.bf16.msra.mxu0 %v37
    %48 = vmatprep.subr.bf16.mxu0 0
    %49 = vmatpush1.bf16.msra.mxu0 0
    %50 = vmatprep.subr.bf16.mxu0 0
    %51 = vmatpush1.bf16.msra.mxu0 0
    %52 = vmatprep.subr.bf16.mxu0 0
    %53 = vmatpush1.bf16.msra.mxu0 0
    %54 = vmatprep.subr.bf16.mxu0 0
    %55 = vmatpush1.bf16.msra.mxu0 0
    %56 = vmatprep.subr.bf16.mxu0 0
    %57 = vmatpush1.bf16.msra.mxu0 0
    %58 = vmatprep.subr.bf16.mxu0 0
    %59 = vmatpush1.bf16.msra.mxu0 0
    %60 = vmatprep.subr.bf16.mxu0 0
    %61 = vmatpush1.bf16.msra.mxu0 0
    %62 = vmatprep.subr.bf16.mxu0 0
    %63 = vmatpush1.bf16.msra.mxu0 0
    %64 = vmatprep.subr.bf16.mxu0 0
    %65 = vmatpush1.bf16.msra.mxu0 0
    %66 = vmatprep.subr.bf16.mxu0 0
    %67 = vmatpush1.bf16.msra.mxu0 0
    %68 = vmatprep.subr.bf16.mxu0 0
    %69 = vmatpush1.bf16.msra.mxu0 0
    %70 = vmatprep.subr.bf16.mxu0 0
    %71 = vmatpush1.bf16.msra.mxu0 0
    %72 = vmatprep.subr.bf16.mxu0 0
    %73 = vmatpush1.bf16.msra.mxu0 0
    %74 = vmatprep.subr.bf16.mxu0 0
    %75 = vmatpush1.bf16.msra.mxu0 0
    %76 = vmatprep.mubr.bf16.mxu0 0
    %77 = vmatmul.mubr.bf16.gmra.mrb[0].mxu0 %v42
    %v78 = vpop.f32.mrb[0].mxu0
    %v79 = vadd.f32 0.0, %v78
    %v80 = vpop.f32.mrb[0].mxu0
    %v81 = vpop.f32.mrb[0].mxu0
    %v82 = vpop.f32.mrb[0].mxu0
    %83 = vdwg.mxu0
    %v84 = vpack.c.bf16 %v79, %v79
    %v85 = vld [vmem:[%s2] sm:$0x1]
    %v86 = vpack.c.bf16 %v85, %v85
    %v88 = vpack.i.b16 %v86, %v86
    %v90 = vlaneseq
    %v91 = vshrl.u32 %v90, 7
    %v92 = vsub.s32 0, %v91
    %v93 = vrot.slane %v88, %v92
    %v94 = vadd.bf16 %v84, %v93
    %v95 = vmax.bf16 %v94, 0
    %v96 = vld [vmem:[%s3] sm:$0xf]
    %v97 = vld [vmem:[%s3 + $0x4] sm:$0xf]
    %v98 = vld [vmem:[%s3 + $0x8] sm:$0xf]
    %v99 = vld [vmem:[%s3 + $0xc] sm:$0xf]
    %v100 = vld [vmem:[%s3 + $0x10] sm:$0xf]
    %v101 = vld [vmem:[%s3 + $0x14] sm:$0xf]
    %v102 = vld [vmem:[%s3 + $0x18] sm:$0xf]
    %v103 = vld [vmem:[%s3 + $0x1c] sm:$0xf]
    %v104 = vld [vmem:[%s3 + $0x20] sm:$0xf]
    %v105 = vld [vmem:[%s3 + $0x24] sm:$0xf]
    %v106 = vld [vmem:[%s3 + $0x28] sm:$0xf]
    %v107 = vld [vmem:[%s3 + $0x2c] sm:$0xf]
    %v108 = vld [vmem:[%s3 + $0x30] sm:$0xf]
    %v109 = vld [vmem:[%s3 + $0x34] sm:$0xf]
    %v110 = vld [vmem:[%s3 + $0x38] sm:$0xf]
    %v111 = vld [vmem:[%s3 + $0x3c] sm:$0xf]
    %v112 = vld [vmem:[%s4] sm:$0x1]
    %v114 = vlaneseq
    %v115 = vshrl.u32 %v114, 7
    %v116 = vsub.s32 0, %v115
    %v117 = vrot.slane %v112, %v116
    %v135 = vunpack.c.l.b16 %v96
    %v136 = vunpack.c.l.b16 %v97
    %v137 = vunpack.c.l.b16 %v98
    %v138 = vunpack.c.l.b16 %v99
    %v139 = vunpack.c.l.b16 %v100
    %v140 = vunpack.c.l.b16 %v101
    %v141 = vunpack.c.l.b16 %v102
    %v142 = vunpack.c.l.b16 %v103
    %v143 = vunpack.c.l.b16 %v104
    %v144 = vunpack.c.l.b16 %v105
    %v145 = vunpack.c.l.b16 %v106
    %v146 = vunpack.c.l.b16 %v107
    %v147 = vunpack.c.l.b16 %v108
    %v148 = vunpack.c.l.b16 %v109
    %v149 = vunpack.c.l.b16 %v110
    %v150 = vunpack.c.l.b16 %v111
    %v151 = vpack.c.b16 %v136, %v135
    %v152 = vpack.c.b16 %v138, %v137
    %v153 = vpack.c.b16 %v140, %v139
    %v154 = vpack.c.b16 %v142, %v141
    %v155 = vpack.c.b16 %v144, %v143
    %v156 = vpack.c.b16 %v146, %v145
    %v157 = vpack.c.b16 %v148, %v147
    %v158 = vpack.c.b16 %v150, %v149
    %167 = vmatprep.subr.bf16.mxu0 0
    %168 = vmatpush1.bf16.msra.mxu0 %v151
    %169 = vmatprep.subr.bf16.mxu0 0
    %170 = vmatpush1.bf16.msra.mxu0 %v152
    %171 = vmatprep.subr.bf16.mxu0 0
    %172 = vmatpush1.bf16.msra.mxu0 %v153
    %173 = vmatprep.subr.bf16.mxu0 0
    %174 = vmatpush1.bf16.msra.mxu0 %v154
    %175 = vmatprep.subr.bf16.mxu0 0
    %176 = vmatpush1.bf16.msra.mxu0 %v155
    %177 = vmatprep.subr.bf16.mxu0 0
    %178 = vmatpush1.bf16.msra.mxu0 %v156
    %179 = vmatprep.subr.bf16.mxu0 0
    %180 = vmatpush1.bf16.msra.mxu0 %v157
    %181 = vmatprep.subr.bf16.mxu0 0
    %182 = vmatpush1.bf16.msra.mxu0 %v158
    %183 = vmatprep.subr.bf16.mxu0 0
    %184 = vmatpush1.bf16.msra.mxu0 0
    %185 = vmatprep.subr.bf16.mxu0 0
    %186 = vmatpush1.bf16.msra.mxu0 0
    %187 = vmatprep.subr.bf16.mxu0 0
    %188 = vmatpush1.bf16.msra.mxu0 0
    %189 = vmatprep.subr.bf16.mxu0 0
    %190 = vmatpush1.bf16.msra.mxu0 0
    %191 = vmatprep.subr.bf16.mxu0 0
    %192 = vmatpush1.bf16.msra.mxu0 0
    %193 = vmatprep.subr.bf16.mxu0 0
    %194 = vmatpush1.bf16.msra.mxu0 0
    %195 = vmatprep.subr.bf16.mxu0 0
    %196 = vmatpush1.bf16.msra.mxu0 0
    %197 = vmatprep.subr.bf16.mxu0 0
    %198 = vmatpush1.bf16.msra.mxu0 0
    %199 = vmatprep.mubr.bf16.mxu0 0
    %200 = vmatmul.mubr.bf16.gmra.mrb[0].mxu0 %v95
    %v201 = vpop.f32.mrb[0].mxu0
    %v202 = vadd.f32 %v117, %v201
    %v203 = vpop.f32.mrb[0].mxu0
    %v204 = vpop.f32.mrb[0].mxu0
    %v205 = vpop.f32.mrb[0].mxu0
    %206 = vdwg.mxu0
    %vm207 = vcmask 130048
    %208 = vst.msk [vmem:[#allocation2] sm:$0xff] %vm207, %v202
    // Predicated region
    $region22: #{mlp_forward.1} parent=1 // pred_check
      _
    $region23: #{mlp_forward.1} parent=1 // pred_check_branch
      %210 = sbr.rel (0) target = $region25
    $region24: #{mlp_forward.1} parent=1 // pred_region
      %s212 = ssub.s32 128, 128
      %213 = vsyncadd [#allocation3], %s212
      %s215 = sshll.u32 [#allocation2], 4
      %s216 = int_to_ptr.vmem [resolvable:$true] %s215
      %218 = dma.vmem_to_hbm [thread:$0]  %s216, 128, %s5, [#allocation3]
    $region25: #{mlp_forward.1} parent=1 // pred_fallthru
      _
    // Predicated region
    $region26: #{mlp_forward.1} parent=1 // pred_check
      _
    $region27: #{mlp_forward.1} parent=1 // pred_check_branch
      %220 = sbr.rel (0) target = $region29
    $region28: #{mlp_forward.1} parent=1 // pred_region
      %221 = dma.done [#allocation3], 128
    $region29: #{mlp_forward.1} parent=1 // pred_fallthru
      _
    %222 = vsyncpa [#allocation3], 1

</llo_original>
